<compile_context>
chip_gen: v5e
topology: v5e:2x2
jax: 0.10.0
libtpu: 0.0.40
codegen_flags: <defaults>
</compile_context>

<pallas_src>
import jax
import jax.numpy as jnp
from jax.experimental import pallas as pl
from jax.experimental.pallas import tpu as pltpu


# ---------------------------------------------------------------------------
# Transform matrices (f32, deterministic; no learnable parameters).
# ---------------------------------------------------------------------------
def dct_matrix(N):
    """D[k, n] = 2*cos(pi*(2n+1)*k/(2N))  ->  dct(x) = D @ x  (norm=None, x2 scaling)."""
    n = jnp.arange(N, dtype=jnp.float32)
    k = jnp.arange(N, dtype=jnp.float32)
    return 2.0 * jnp.cos(jnp.pi * (2.0 * n[None, :] + 1.0) * k[:, None] / (2.0 * N))


def idct_matrix(N):
    """B[n, k]: exact inverse of dct_matrix(N) (norm=None); idct(X) = B @ X."""
    n = jnp.arange(N, dtype=jnp.float32)
    k = jnp.arange(N, dtype=jnp.float32)
    m = jnp.cos(jnp.pi * k[None, :] * (2.0 * n[:, None] + 1.0) / (2.0 * N)) / N
    m = m.at[:, 0].set(0.5 / N)
    return m


# ---------------------------------------------------------------------------
# Helpers.
# ---------------------------------------------------------------------------
def _round_up(a, m):
    return -(-a // m) * m


def _vmem_capacity_bytes():
    try:
        cap = int(pltpu.get_tpu_info().vmem_capacity_bytes)
        return min(cap, 128 << 20)
    except Exception:
        return 64 << 20          # conservative fallback (v7x per-TensorCore VMEM)


def _pick_tb(B, per_row_bytes, reserved_bytes, vmem_cap):
    """Images per grid step, budgeted against *tiled* (padded, double-buffered) VMEM bytes."""
    budget = max(int(0.40 * vmem_cap) - reserved_bytes, 8 * per_row_bytes)
    tb = budget // per_row_bytes
    if B >= 32:
        # keep >= ~4 grid steps so both v7x TensorCores get >= 2 pipelined steps each
        tb = min(tb, max(8, ((-(-B // 4)) // 8) * 8))
    if tb >= B:
        return int(B)                    # single full-extent block (always a legal height)
    return int(max(8, (tb // 8) * 8))    # sublane-legal (multiple of 8) block height


# ---------------------------------------------------------------------------
# Main path: one lane-dense GEMM against the Kronecker-precomposed matrix.
#   kt_ref : (H*W, outH*outW)   compute dtype
#   x_ref  : (TB, H*W)          caller dtype (cast in-kernel)
#   o_ref  : (TB, outH*outW)    output dtype
# ---------------------------------------------------------------------------
def _kron_kernel(kt_ref, x_ref, o_ref):
    xb = x_ref[...].astype(kt_ref.dtype)
    out = jnp.dot(xb, kt_ref[...], preferred_element_type=jnp.float32)
    o_ref[...] = out.astype(o_ref.dtype)


# ---------------------------------------------------------------------------
# Fallback path (large images where the Kronecker matrix would not fit VMEM):
# two-stage  out[b] = M_H @ x[b] @ M_W^T  for TB images per grid step.
# ---------------------------------------------------------------------------
def _two_stage_kernel(mwt_ref, mh_ref, x_ref, o_ref):
    outH, H = mh_ref.shape               # (outH, H)
    W, outW = mwt_ref.shape              # (W, outW)
    TB = x_ref.shape[0] // H             # x_ref: (TB*H, W)
    xb = x_ref[...].astype(mwt_ref.dtype)
    y1 = jnp.dot(xb, mwt_ref[...], preferred_element_type=jnp.float32)   # (TB*H, outW)
    y1 = y1.reshape(TB, H, outW).astype(mh_ref.dtype)
    mh = jnp.broadcast_to(mh_ref[...], (TB, outH, H))
    out = jnp.einsum("bih,bhj->bij", mh, y1, preferred_element_type=jnp.float32)
    o_ref[...] = out.astype(o_ref.dtype)


# ---------------------------------------------------------------------------
# Forward pass equivalent to DCT.forward (opt.scale=[int_scale], opt.float_scale).
# ---------------------------------------------------------------------------
def dct_forward(x, int_scale=2, float_scale=0.5,
                compute_dtype=jnp.bfloat16, block_batch=None):
    # Intentionally mirrors the PyTorch module's Python float arithmetic exactly.
    scale = int_scale + float_scale
    res_scale = scale / int_scale
    N, C, H, W = x.shape
    outH, outW = int(H * res_scale), int(W * res_scale)
    B = N * C
    HW, outHW = H * W, outH * outW
    out_dtype = x.dtype

    x_isz = jnp.dtype(x.dtype).itemsize
    out_isz = jnp.dtype(out_dtype).itemsize
    cmp_isz = jnp.dtype(compute_dtype).itemsize
    vmem_cap = _vmem_capacity_bytes()
    vmem_limit = max(32 << 20, min(int(0.75 * vmem_cap), 100 << 20))

    # Pre-compose dct_2d -> zero-pad -> idct_2d into one matrix pair (f32).
    Mh = idct_matrix(outH)[:, :H] @ dct_matrix(H)      # (outH, H)
    Mw = idct_matrix(outW)[:, :W] @ dct_matrix(W)      # (outW, W)

    # Tiled (padded) size of the Kronecker matrix, double-buffered.
    kt_tiled = 2 * _round_up(HW, 16) * _round_up(outHW, 128) * cmp_isz
    use_kron = kt_tiled <= vmem_cap // 8

    if use_kron:
        # K[i*outW+j, h*W+w] = Mh[i,h]*Mw[j,w]  ->  out_flat = x_flat @ K^T
        Kt = ((Mh[:, None, :, None] * Mw[None, :, None, :])
              .reshape(outHW, HW).T.astype(compute_dtype))           # (HW, outHW)

        per_row = (2 * _round_up(HW, 128) * x_isz          # input block, double-buffered
                   + _round_up(HW, 128) * cmp_isz          # in-kernel cast copy of x block
                   + _round_up(outHW, 128) * 4             # f32 GEMM result (pre-cast)
                   + 2 * _round_up(outHW, 128) * out_isz)  # output block, double-buffered
        TB = block_batch if block_batch is not None else _pick_tb(
            B, per_row, kt_tiled, vmem_cap)
        G = pl.cdiv(B, TB)

        x_flat = x.reshape(B, HW)        # free reshape; original dtype (no HBM convert pass)
        out = pl.pallas_call(
            _kron_kernel,
            out_shape=jax.ShapeDtypeStruct((B, outHW), out_dtype),
            grid=(G,),
            in_specs=[
                pl.BlockSpec((HW, outHW), lambda i: (0, 0)),   # K^T, shared across steps
                pl.BlockSpec((TB, HW), lambda i: (i, 0)),      # lane-dense input rows
            ],
            out_specs=pl.BlockSpec((TB, outHW), lambda i: (i, 0)),  # lane-dense output
            compiler_params=pltpu.CompilerParams(
                dimension_semantics=("parallel",),
                vmem_limit_bytes=vmem_limit,
            ),
        )(Kt, x_flat)
        return out.reshape(N, C, outH, outW)

    # ---- fallback for large images: two-stage transform ---------------------
    Mwt = Mw.T.astype(compute_dtype)                     # (W, outW)
    Mh_c = Mh.astype(compute_dtype)                      # (outH, H)
    per_img = (2 * H * _round_up(W, 128) * x_isz             # input, double-buffered
               + H * _round_up(W, 128) * cmp_isz             # in-kernel cast copy
               + H * _round_up(outW, 128) * (4 + cmp_isz)    # y1 f32 + cast copy
               + outH * _round_up(H, 128) * cmp_isz          # broadcast M_H copy
               + outH * _round_up(outW, 128) * 4             # f32 einsum result
               + 2 * outH * _round_up(outW, 128) * out_isz)  # output, double-buffered
    mats = 2 * (_round_up(W, 16) * _round_up(outW, 128)
                + _round_up(outH, 16) * _round_up(H, 128)) * cmp_isz
    TB = block_batch if block_batch is not None else _pick_tb(
        B, per_img, mats, vmem_cap)
    G = pl.cdiv(B, TB)

    x2d = x.reshape(B * H, W)            # original dtype; cast happens inside the kernel
    out = pl.pallas_call(
        _two_stage_kernel,
        out_shape=jax.ShapeDtypeStruct((B, outH, outW), out_dtype),
        grid=(G,),
        in_specs=[
            pl.BlockSpec((W, outW), lambda i: (0, 0)),        # M_W^T (shared per step)
            pl.BlockSpec((outH, H), lambda i: (0, 0)),        # M_H   (shared per step)
            pl.BlockSpec((TB * H, W), lambda i: (i, 0)),      # TB images, flattened rows
        ],
        out_specs=pl.BlockSpec((TB, outH, outW), lambda i: (i, 0, 0)),
        compiler_params=pltpu.CompilerParams(
            dimension_semantics=("parallel",),
            vmem_limit_bytes=vmem_limit,
        ),
    )(Mwt, Mh_c, x2d)
    return out.reshape(N, C, outH, outW)


# Pure-JAX f32 reference of the original dct -> pad -> idct formulation (validation only).
def _dct_forward_ref(x, int_scale=2, float_scale=0.5):
    scale = int_scale + float_scale
    res_scale = scale / int_scale
    N, C, H, W = x.shape
    outH, outW = int(H * res_scale), int(W * res_scale)
    Dh, Dw = dct_matrix(H), dct_matrix(W)
    Bh, Bw = idct_matrix(outH), idct_matrix(outW)
    x32 = x.astype(jnp.float32)
    y = jnp.einsum("hk,nckw,wl->nchl", Dh, x32, Dw.T)
    y = jnp.pad(y, ((0, 0), (0, 0), (0, outH - H), (0, outW - W)))
    out = jnp.einsum("hk,nckw,wl->nchl", Bh, y, Bw.T)
    return out.astype(x.dtype)


if __name__ == "__main__":
    key = jax.random.PRNGKey(0)
    N, C, H, W = 2, 4, 16, 16
    x = jax.random.normal(key, (N, C, H, W), dtype=jnp.float32)

    ref = _dct_forward_ref(x)   # res_scale = 2.5/2 = 1.25 -> 16 -> 20

    # f32-operand path (Kronecker GEMM): strict numerical check vs pad-then-idct reference.
    out_f32 = jax.block_until_ready(dct_forward(x, compute_dtype=jnp.float32))
    assert out_f32.shape == (N, C, 20, 20), out_f32.shape
    assert jnp.allclose(out_f32, ref, atol=1e-3, rtol=1e-3)

    # Default path (bf16 operands, f32 MXU accumulation): loose check.
    out_bf16 = jax.block_until_ready(dct_forward(x))
    assert out_bf16.shape == (N, C, 20, 20), out_bf16.shape
    assert jnp.allclose(out_bf16, ref, atol=1e-1, rtol=1e-1)

    # Larger image exercises the two-stage fallback kernel (Kronecker matrix too big).
    x_big = jax.random.normal(jax.random.PRNGKey(1), (1, 2, 64, 64), dtype=jnp.float32)
    ref_big = _dct_forward_ref(x_big)
    out_big = jax.block_until_ready(dct_forward(x_big, compute_dtype=jnp.float32))
    assert out_big.shape == (1, 2, 80, 80), out_big.shape
    assert jnp.allclose(out_big, ref_big, atol=1e-2, rtol=1e-2)

    print("KERNEL_OK")
</pallas_src>

<mosaic_0001>
module attributes {stable_mosaic.version = 11 : i64} {
  func.func @_kron_kernel(%arg0: i32, %arg1: memref<256x400xf32, #tpu.memory_space<vmem>>, %arg2: memref<8x256xf32, #tpu.memory_space<vmem>>, %arg3: memref<8x400xf32, #tpu.memory_space<vmem>>) attributes {dimension_semantics = [#tpu.dimension_semantics<parallel>], iteration_bounds = array<i64: 1>, scalar_prefetch = 0 : i64, scratch_operands = 0 : i64, tpu.core_type = #tpu.core_type<tc>, window_params = [{pipeline_mode = #tpu.pipeline_mode<synchronous>, transform_indices = @transform_0, window_bounds = array<i64: 256, 400>}, {transform_indices = @transform_1, window_bounds = array<i64: 8, 256>}, {transform_indices = @transform_2, window_bounds = array<i64: 8, 400>}]} {
    %c0 = arith.constant 0 : index
    %c0_0 = arith.constant 0 : index
    %0 = vector.load %arg2[%c0, %c0_0] : memref<8x256xf32, #tpu.memory_space<vmem>>, vector<8x256xf32>
    %c0_1 = arith.constant 0 : index
    %c0_2 = arith.constant 0 : index
    %1 = vector.load %arg1[%c0_1, %c0_2] : memref<256x400xf32, #tpu.memory_space<vmem>>, vector<256x400xf32>
    %cst = arith.constant dense<0.000000e+00> : vector<8x400xf32>
    %2 = tpu.matmul %0, %1, %cst {dimension_numbers = #tpu.dot_dimension_numbers<[1], [0], [0], [1], [0, 0, 1, 1], [], []>} : vector<8x256xf32>, vector<256x400xf32>, vector<8x400xf32> -> vector<8x400xf32>
    %c0_3 = arith.constant 0 : index
    %c0_4 = arith.constant 0 : index
    %3 = vector.load %arg3[%c0_3, %c0_4] : memref<8x400xf32, #tpu.memory_space<vmem>>, vector<8x400xf32>
    tpu.vector_store %arg3[%c0_3, %c0_4], %2 {strides = array<i32>} : memref<8x400xf32, #tpu.memory_space<vmem>>, vector<8x400xf32>,
    return
  }
  func.func @transform_0(%arg0: i32) -> (i32, i32) {
    %c0_i32 = arith.constant 0 : i32
    %c0_i32_0 = arith.constant 0 : i32
    %c0_i32_1 = arith.constant 0 : i32
    return %c0_i32, %c0_i32_0 : i32, i32
  }
  func.func @transform_1(%arg0: i32) -> (i32, i32) {
    %c0_i32 = arith.constant 0 : i32
    %c0_i32_0 = arith.constant 0 : i32
    return %arg0, %c0_i32 : i32, i32
  }
  func.func @transform_2(%arg0: i32) -> (i32, i32) {
    %c0_i32 = arith.constant 0 : i32
    %c0_i32_0 = arith.constant 0 : i32
    return %arg0, %c0_i32 : i32, i32
  }
}

</mosaic_0001>

<llo_original>
// kernel: tpu_custom_call.1
$region0: #{tpu_custom_call.1}
  #allocation0 [shape = 'u32[]', space=smem, size = 0x4, offset = 0x4, fixed_abs, tag = 'smem constant byte address 0x4 - core index']
  #allocation1 [shape = 'u32[72,128]{1,0:T(1,128)}', space=vmem, size = 0x9000, scoped, tag = 'internal scratch']
  %s0 = inlined_call_operand.vmem [shape: f32[256,400], index: 0, kind: input, shape index: {}]
  %s1 = inlined_call_operand.vmem [shape: f32[8,256], index: 1, kind: input, shape index: {}]
  %s2 = inlined_call_operand.hbm [shape: f32[8,400], index: 2, kind: output, shape index: {}]
  %s3 = sld [smem:[#allocation0]]
  $region18: #{tpu_custom_call.1} parent=0
    _
  %s5 = ssub.s32 1, %s3
  %s6 = scalar_select 0, %s5, %s3
  $region1: #{tpu_custom_call.1} parent=0
    #allocation2 [shape = 'u8[16384]{0}', space=vmem, size = 0x4000, scoped, tag = 'output window, operand 0, single buffered']
    #allocation3 [shape = 's32[1]{0}', space=sflag, size = 0x4, scoped, tag = 'scoped memory for tpu_custom_call.1']
    %7 = vsyncpa [#allocation3], 0
    // Predicated region
    $region2: #{tpu_custom_call.1} parent=1 // pred_check
      _
    $region3: #{tpu_custom_call.1} parent=1 // pred_check_branch
      %9 = sbr.rel (0) target = $region5
    $region4: #{tpu_custom_call.1} parent=1 // pred_region
      _
    $region5: #{tpu_custom_call.1} parent=1 // pred_fallthru
      _
    // Predicated region
    $region6: #{tpu_custom_call.1} parent=1 // pred_check
      _
    $region7: #{tpu_custom_call.1} parent=1 // pred_check_branch
      %11 = sbr.rel (0) target = $region9
    $region8: #{tpu_custom_call.1} parent=1 // pred_region
      _
    $region9: #{tpu_custom_call.1} parent=1 // pred_fallthru
      _
    %v12 = vld [vmem:[%s1] sm:$0xff]
    %v13 = vld [vmem:[%s1 + $0x8] sm:$0xff]
    %v14 = vld [vmem:[%s0] sm:$0xff]
    %v15 = vld [vmem:[%s0 + $0x8] sm:$0xff]
    %v16 = vld [vmem:[%s0 + $0x10] sm:$0xff]
    %v17 = vld [vmem:[%s0 + $0x18] sm:$0xff]
    %v18 = vld [vmem:[%s0 + $0x20] sm:$0xff]
    %v19 = vld [vmem:[%s0 + $0x28] sm:$0xff]
    %v20 = vld [vmem:[%s0 + $0x30] sm:$0xff]
    %v21 = vld [vmem:[%s0 + $0x38] sm:$0xff]
    %v22 = vld [vmem:[%s0 + $0x40] sm:$0xff]
    %v23 = vld [vmem:[%s0 + $0x48] sm:$0xff]
    %v24 = vld [vmem:[%s0 + $0x50] sm:$0xff]
    %v25 = vld [vmem:[%s0 + $0x58] sm:$0xff]
    %v26 = vld [vmem:[%s0 + $0x60] sm:$0xff]
    %v27 = vld [vmem:[%s0 + $0x68] sm:$0xff]
    %v28 = vld [vmem:[%s0 + $0x70] sm:$0xff]
    %v29 = vld [vmem:[%s0 + $0x78] sm:$0xff]
    %v30 = vld [vmem:[%s0 + $0x80] sm:$0xff]
    %v31 = vld [vmem:[%s0 + $0x88] sm:$0xff]
    %v32 = vld [vmem:[%s0 + $0x90] sm:$0xff]
    %v33 = vld [vmem:[%s0 + $0x98] sm:$0xff]
    %v34 = vld [vmem:[%s0 + $0xa0] sm:$0xff]
    %v35 = vld [vmem:[%s0 + $0xa8] sm:$0xff]
    %v36 = vld [vmem:[%s0 + $0xb0] sm:$0xff]
    %v37 = vld [vmem:[%s0 + $0xb8] sm:$0xff]
    %v38 = vld [vmem:[%s0 + $0xc0] sm:$0xff]
    %v39 = vld [vmem:[%s0 + $0xc8] sm:$0xff]
    %v40 = vld [vmem:[%s0 + $0xd0] sm:$0xff]
    %v41 = vld [vmem:[%s0 + $0xd8] sm:$0xff]
    %v42 = vld [vmem:[%s0 + $0xe0] sm:$0xff]
    %v43 = vld [vmem:[%s0 + $0xe8] sm:$0xff]
    %v44 = vld [vmem:[%s0 + $0xf0] sm:$0xff]
    %v45 = vld [vmem:[%s0 + $0xf8] sm:$0xff]
    %v46 = vld [vmem:[%s0 + $0x100] sm:$0xff]
    %v47 = vld [vmem:[%s0 + $0x108] sm:$0xff]
    %v48 = vld [vmem:[%s0 + $0x110] sm:$0xff]
    %v49 = vld [vmem:[%s0 + $0x118] sm:$0xff]
    %v50 = vld [vmem:[%s0 + $0x120] sm:$0xff]
    %v51 = vld [vmem:[%s0 + $0x128] sm:$0xff]
    %v52 = vld [vmem:[%s0 + $0x130] sm:$0xff]
    %v53 = vld [vmem:[%s0 + $0x138] sm:$0xff]
    %v54 = vld [vmem:[%s0 + $0x140] sm:$0xff]
    %v55 = vld [vmem:[%s0 + $0x148] sm:$0xff]
    %v56 = vld [vmem:[%s0 + $0x150] sm:$0xff]
    %v57 = vld [vmem:[%s0 + $0x158] sm:$0xff]
    %v58 = vld [vmem:[%s0 + $0x160] sm:$0xff]
    %v59 = vld [vmem:[%s0 + $0x168] sm:$0xff]
    %v60 = vld [vmem:[%s0 + $0x170] sm:$0xff]
    %v61 = vld [vmem:[%s0 + $0x178] sm:$0xff]
    %v62 = vld [vmem:[%s0 + $0x180] sm:$0xff]
    %v63 = vld [vmem:[%s0 + $0x188] sm:$0xff]
    %v64 = vld [vmem:[%s0 + $0x190] sm:$0xff]
    %v65 = vld [vmem:[%s0 + $0x198] sm:$0xff]
    %v66 = vld [vmem:[%s0 + $0x1a0] sm:$0xff]
    %v67 = vld [vmem:[%s0 + $0x1a8] sm:$0xff]
    %v68 = vld [vmem:[%s0 + $0x1b0] sm:$0xff]
    %v69 = vld [vmem:[%s0 + $0x1b8] sm:$0xff]
    %v70 = vld [vmem:[%s0 + $0x1c0] sm:$0xff]
    %v71 = vld [vmem:[%s0 + $0x1c8] sm:$0xff]
    %v72 = vld [vmem:[%s0 + $0x1d0] sm:$0xff]
    %v73 = vld [vmem:[%s0 + $0x1d8] sm:$0xff]
    %v74 = vld [vmem:[%s0 + $0x1e0] sm:$0xff]
    %v75 = vld [vmem:[%s0 + $0x1e8] sm:$0xff]
    %v76 = vld [vmem:[%s0 + $0x1f0] sm:$0xff]
    %v77 = vld [vmem:[%s0 + $0x1f8] sm:$0xff]
    %v78 = vld [vmem:[%s0 + $0x200] sm:$0xff]
    %v79 = vld [vmem:[%s0 + $0x208] sm:$0xff]
    %v80 = vld [vmem:[%s0 + $0x210] sm:$0xff]
    %v81 = vld [vmem:[%s0 + $0x218] sm:$0xff]
    %v82 = vld [vmem:[%s0 + $0x220] sm:$0xff]
    %v83 = vld [vmem:[%s0 + $0x228] sm:$0xff]
    %v84 = vld [vmem:[%s0 + $0x230] sm:$0xff]
    %v85 = vld [vmem:[%s0 + $0x238] sm:$0xff]
    %v86 = vld [vmem:[%s0 + $0x240] sm:$0xff]
    %v87 = vld [vmem:[%s0 + $0x248] sm:$0xff]
    %v88 = vld [vmem:[%s0 + $0x250] sm:$0xff]
    %v89 = vld [vmem:[%s0 + $0x258] sm:$0xff]
    %v90 = vld [vmem:[%s0 + $0x260] sm:$0xff]
    %v91 = vld [vmem:[%s0 + $0x268] sm:$0xff]
    %v92 = vld [vmem:[%s0 + $0x270] sm:$0xff]
    %v93 = vld [vmem:[%s0 + $0x278] sm:$0xff]
    %v94 = vld [vmem:[%s0 + $0x280] sm:$0xff]
    %v95 = vld [vmem:[%s0 + $0x288] sm:$0xff]
    %v96 = vld [vmem:[%s0 + $0x290] sm:$0xff]
    %v97 = vld [vmem:[%s0 + $0x298] sm:$0xff]
    %v98 = vld [vmem:[%s0 + $0x2a0] sm:$0xff]
    %v99 = vld [vmem:[%s0 + $0x2a8] sm:$0xff]
    %v100 = vld [vmem:[%s0 + $0x2b0] sm:$0xff]
    %v101 = vld [vmem:[%s0 + $0x2b8] sm:$0xff]
    %v102 = vld [vmem:[%s0 + $0x2c0] sm:$0xff]
    %v103 = vld [vmem:[%s0 + $0x2c8] sm:$0xff]
    %v104 = vld [vmem:[%s0 + $0x2d0] sm:$0xff]
    %v105 = vld [vmem:[%s0 + $0x2d8] sm:$0xff]
    %v106 = vld [vmem:[%s0 + $0x2e0] sm:$0xff]
    %v107 = vld [vmem:[%s0 + $0x2e8] sm:$0xff]
    %v108 = vld [vmem:[%s0 + $0x2f0] sm:$0xff]
    %v109 = vld [vmem:[%s0 + $0x2f8] sm:$0xff]
    %v110 = vld [vmem:[%s0 + $0x300] sm:$0xff]
    %v111 = vld [vmem:[%s0 + $0x308] sm:$0xff]
    %v112 = vld [vmem:[%s0 + $0x310] sm:$0xff]
    %v113 = vld [vmem:[%s0 + $0x318] sm:$0xff]
    %v114 = vld [vmem:[%s0 + $0x320] sm:$0xff]
    %v115 = vld [vmem:[%s0 + $0x328] sm:$0xff]
    %v116 = vld [vmem:[%s0 + $0x330] sm:$0xff]
    %v117 = vld [vmem:[%s0 + $0x338] sm:$0xff]
    %v118 = vld [vmem:[%s0 + $0x340] sm:$0xff]
    %v119 = vld [vmem:[%s0 + $0x348] sm:$0xff]
    %v120 = vld [vmem:[%s0 + $0x350] sm:$0xff]
    %v121 = vld [vmem:[%s0 + $0x358] sm:$0xff]
    %v122 = vld [vmem:[%s0 + $0x360] sm:$0xff]
    %v123 = vld [vmem:[%s0 + $0x368] sm:$0xff]
    %v124 = vld [vmem:[%s0 + $0x370] sm:$0xff]
    %v125 = vld [vmem:[%s0 + $0x378] sm:$0xff]
    %v126 = vld [vmem:[%s0 + $0x380] sm:$0xff]
    %v127 = vld [vmem:[%s0 + $0x388] sm:$0xff]
    %v128 = vld [vmem:[%s0 + $0x390] sm:$0xff]
    %v129 = vld [vmem:[%s0 + $0x398] sm:$0xff]
    %v130 = vld [vmem:[%s0 + $0x3a0] sm:$0xff]
    %v131 = vld [vmem:[%s0 + $0x3a8] sm:$0xff]
    %v132 = vld [vmem:[%s0 + $0x3b0] sm:$0xff]
    %v133 = vld [vmem:[%s0 + $0x3b8] sm:$0xff]
    %v134 = vld [vmem:[%s0 + $0x3c0] sm:$0xff]
    %v135 = vld [vmem:[%s0 + $0x3c8] sm:$0xff]
    %v136 = vld [vmem:[%s0 + $0x3d0] sm:$0xff]
    %v137 = vld [vmem:[%s0 + $0x3d8] sm:$0xff]
    %v138 = vld [vmem:[%s0 + $0x3e0] sm:$0xff]
    %v139 = vld [vmem:[%s0 + $0x3e8] sm:$0xff]
    %v140 = vld [vmem:[%s0 + $0x3f0] sm:$0xff]
    %v141 = vld [vmem:[%s0 + $0x3f8] sm:$0xff]
    %142 = vmatpush.msra.mxu0 %v74
    %143 = vmatpush.msra.mxu0 %v70
    %144 = vmatpush.msra.mxu0 %v66
    %145 = vmatpush.msra.mxu0 %v62
    %146 = vmatpush.msra.mxu0 %v58
    %147 = vmatpush.msra.mxu0 %v54
    %148 = vmatpush.msra.mxu0 %v50
    %149 = vmatpush.msra.mxu0 %v46
    %150 = vmatpush.msra.mxu0 %v42
    %151 = vmatpush.msra.mxu0 %v38
    %152 = vmatpush.msra.mxu0 %v34
    %153 = vmatpush.msra.mxu0 %v30
    %154 = vmatpush.msra.mxu0 %v26
    %155 = vmatpush.msra.mxu0 %v22
    %156 = vmatpush.msra.mxu0 %v18
    %157 = vmatpush.msra.mxu0 %v14
    %158 = vmatmul.f32.gmra.mxu0 %v12
    %v159 = vpop.f32.mrf.mxu0
    %v160 = vadd.f32 0.0, %v159
    %161 = vdwg.mxu0
    %162 = vmatpush.msra.mxu0 %v138
    %163 = vmatpush.msra.mxu0 %v134
    %164 = vmatpush.msra.mxu0 %v130
    %165 = vmatpush.msra.mxu0 %v126
    %166 = vmatpush.msra.mxu0 %v122
    %167 = vmatpush.msra.mxu0 %v118
    %168 = vmatpush.msra.mxu0 %v114
    %169 = vmatpush.msra.mxu0 %v110
    %170 = vmatpush.msra.mxu0 %v106
    %171 = vmatpush.msra.mxu0 %v102
    %172 = vmatpush.msra.mxu0 %v98
    %173 = vmatpush.msra.mxu0 %v94
    %174 = vmatpush.msra.mxu0 %v90
    %175 = vmatpush.msra.mxu0 %v86
    %176 = vmatpush.msra.mxu0 %v82
    %177 = vmatpush.msra.mxu0 %v78
    %178 = vmatmul.f32.gmra.mxu0 %v13
    %v179 = vpop.f32.mrf.mxu0
    %v180 = vadd.f32 %v160, %v179
    %181 = vdwg.mxu0
    %182 = vmatpush.msra.mxu0 %v75
    %183 = vmatpush.msra.mxu0 %v71
    %184 = vmatpush.msra.mxu0 %v67
    %185 = vmatpush.msra.mxu0 %v63
    %186 = vmatpush.msra.mxu0 %v59
    %187 = vmatpush.msra.mxu0 %v55
    %188 = vmatpush.msra.mxu0 %v51
    %189 = vmatpush.msra.mxu0 %v47
    %190 = vmatpush.msra.mxu0 %v43
    %191 = vmatpush.msra.mxu0 %v39
    %192 = vmatpush.msra.mxu0 %v35
    %193 = vmatpush.msra.mxu0 %v31
    %194 = vmatpush.msra.mxu0 %v27
    %195 = vmatpush.msra.mxu0 %v23
    %196 = vmatpush.msra.mxu0 %v19
    %197 = vmatpush.msra.mxu0 %v15
    %198 = vmatmul.f32.gmra.mxu0 %v12
    %v199 = vpop.f32.mrf.mxu0
    %v200 = vadd.f32 0.0, %v199
    %201 = vdwg.mxu0
    %202 = vmatpush.msra.mxu0 %v139
    %203 = vmatpush.msra.mxu0 %v135
    %204 = vmatpush.msra.mxu0 %v131
    %205 = vmatpush.msra.mxu0 %v127
    %206 = vmatpush.msra.mxu0 %v123
    %207 = vmatpush.msra.mxu0 %v119
    %208 = vmatpush.msra.mxu0 %v115
    %209 = vmatpush.msra.mxu0 %v111
    %210 = vmatpush.msra.mxu0 %v107
    %211 = vmatpush.msra.mxu0 %v103
    %212 = vmatpush.msra.mxu0 %v99
    %213 = vmatpush.msra.mxu0 %v95
    %214 = vmatpush.msra.mxu0 %v91
    %215 = vmatpush.msra.mxu0 %v87
    %216 = vmatpush.msra.mxu0 %v83
    %217 = vmatpush.msra.mxu0 %v79
    %218 = vmatmul.f32.gmra.mxu0 %v13
    %v219 = vpop.f32.mrf.mxu0
    %v220 = vadd.f32 %v200, %v219
    %221 = vdwg.mxu0
    %222 = vmatpush.msra.mxu0 %v76
    %223 = vmatpush.msra.mxu0 %v72
    %224 = vmatpush.msra.mxu0 %v68
    %225 = vmatpush.msra.mxu0 %v64
    %226 = vmatpush.msra.mxu0 %v60
    %227 = vmatpush.msra.mxu0 %v56
    %228 = vmatpush.msra.mxu0 %v52
    %229 = vmatpush.msra.mxu0 %v48
    %230 = vmatpush.msra.mxu0 %v44
    %231 = vmatpush.msra.mxu0 %v40
    %232 = vmatpush.msra.mxu0 %v36
    %233 = vmatpush.msra.mxu0 %v32
    %234 = vmatpush.msra.mxu0 %v28
    %235 = vmatpush.msra.mxu0 %v24
    %236 = vmatpush.msra.mxu0 %v20
    %237 = vmatpush.msra.mxu0 %v16
    %238 = vmatmul.f32.gmra.mxu0 %v12
    %v239 = vpop.f32.mrf.mxu0
    %v240 = vadd.f32 0.0, %v239
    %241 = vdwg.mxu0
    %242 = vmatpush.msra.mxu0 %v140
    %243 = vmatpush.msra.mxu0 %v136
    %244 = vmatpush.msra.mxu0 %v132
    %245 = vmatpush.msra.mxu0 %v128
    %246 = vmatpush.msra.mxu0 %v124
    %247 = vmatpush.msra.mxu0 %v120
    %248 = vmatpush.msra.mxu0 %v116
    %249 = vmatpush.msra.mxu0 %v112
    %250 = vmatpush.msra.mxu0 %v108
    %251 = vmatpush.msra.mxu0 %v104
    %252 = vmatpush.msra.mxu0 %v100
    %253 = vmatpush.msra.mxu0 %v96
    %254 = vmatpush.msra.mxu0 %v92
    %255 = vmatpush.msra.mxu0 %v88
    %256 = vmatpush.msra.mxu0 %v84
    %257 = vmatpush.msra.mxu0 %v80
    %258 = vmatmul.f32.gmra.mxu0 %v13
    %v259 = vpop.f32.mrf.mxu0
    %v260 = vadd.f32 %v240, %v259
    %261 = vdwg.mxu0
    %262 = vmatpush.msra.mxu0 %v77
    %263 = vmatpush.msra.mxu0 %v73
    %264 = vmatpush.msra.mxu0 %v69
    %265 = vmatpush.msra.mxu0 %v65
    %266 = vmatpush.msra.mxu0 %v61
    %267 = vmatpush.msra.mxu0 %v57
    %268 = vmatpush.msra.mxu0 %v53
    %269 = vmatpush.msra.mxu0 %v49
    %270 = vmatpush.msra.mxu0 %v45
    %271 = vmatpush.msra.mxu0 %v41
    %272 = vmatpush.msra.mxu0 %v37
    %273 = vmatpush.msra.mxu0 %v33
    %274 = vmatpush.msra.mxu0 %v29
    %275 = vmatpush.msra.mxu0 %v25
    %276 = vmatpush.msra.mxu0 %v21
    %277 = vmatpush.msra.mxu0 %v17
    %278 = vmatmul.f32.gmra.mxu0 %v12
    %v279 = vpop.f32.mrf.mxu0
    %v280 = vadd.f32 0.0, %v279
    %281 = vdwg.mxu0
    %282 = vmatpush.msra.mxu0 %v141
    %283 = vmatpush.msra.mxu0 %v137
    %284 = vmatpush.msra.mxu0 %v133
    %285 = vmatpush.msra.mxu0 %v129
    %286 = vmatpush.msra.mxu0 %v125
    %287 = vmatpush.msra.mxu0 %v121
    %288 = vmatpush.msra.mxu0 %v117
    %289 = vmatpush.msra.mxu0 %v113
    %290 = vmatpush.msra.mxu0 %v109
    %291 = vmatpush.msra.mxu0 %v105
    %292 = vmatpush.msra.mxu0 %v101
    %293 = vmatpush.msra.mxu0 %v97
    %294 = vmatpush.msra.mxu0 %v93
    %295 = vmatpush.msra.mxu0 %v89
    %296 = vmatpush.msra.mxu0 %v85
    %297 = vmatpush.msra.mxu0 %v81
    %298 = vmatmul.f32.gmra.mxu0 %v13
    %v299 = vpop.f32.mrf.mxu0
    %v300 = vadd.f32 %v280, %v299
    %301 = vdwg.mxu0
    %302 = vst [vmem:[#allocation2] sm:$0xff] %v180
    %303 = vst [vmem:[#allocation2 + $0x8] sm:$0xff] %v220
    %304 = vst [vmem:[#allocation2 + $0x10] sm:$0xff] %v260
    %vm305 = vcmask 130048
    %306 = vst.msk [vmem:[#allocation2 + $0x18] sm:$0xff] %vm305, %v300
    // Predicated region
    $region10: #{tpu_custom_call.1} parent=1 // pred_check
      _
    $region11: #{tpu_custom_call.1} parent=1 // pred_check_branch
      %308 = sbr.rel (0) target = $region13
    $region12: #{tpu_custom_call.1} parent=1 // pred_region
      %310 = vsyncadd [#allocation3], 0
      %s312 = sshll.u32 [#allocation2], 4
      %s313 = int_to_ptr.vmem [resolvable:$true] %s312
      %s314 = sshll.u32 %s2, 4
      %s315 = int_to_ptr.hbm [resolvable:$true] %s314
      %317 = dma.vmem_to_hbm [thread:$0]  %s313, 512, %s315, [#allocation3]
    $region13: #{tpu_custom_call.1} parent=1 // pred_fallthru
      _
    // Predicated region
    $region14: #{tpu_custom_call.1} parent=1 // pred_check
      _
    $region15: #{tpu_custom_call.1} parent=1 // pred_check_branch
      %319 = sbr.rel (0) target = $region17
    $region16: #{tpu_custom_call.1} parent=1 // pred_region
      %321 = dma.done [#allocation3], 512
    $region17: #{tpu_custom_call.1} parent=1 // pred_fallthru
      _
    %322 = vsyncpa [#allocation3], 1

</llo_original>
